<compile_context>
chip_gen: v6e
topology: v6e:2x2x1
jax: 0.10.0
libtpu: 0.0.40
codegen_flags: <defaults>
</compile_context>

<pallas_src>
import jax
import jax.numpy as jnp
from jax import lax
from jax.experimental import pallas as pl
from jax.experimental.pallas import tpu as pltpu


# --------------------------------------------------------------------------- #
# Kernel
# --------------------------------------------------------------------------- #
def resblock_kernel(xs_ref, xres_ref, mask_ref, w1_ref, w2_ref, w3_ref, b_ref,
                    o_ref):
    """One chunk of lane-packed image groups per grid step.

    xs_ref  : (M, L)   f32  stacked conv-chain input; per group (stride Hp):
                            [2 zero rows | H data rows | zero rows]
    xres_ref: (M-4, L) f32  residual input, data rows aligned with output rows
    mask_ref: (M-2, L) f32  1.0 on valid layer-1 rows, 0.0 on the pad ring/junk
    w1_ref  : (3L, L)  bf16 layer-1 banded weights, dy taps stacked along K
    w2_ref  : (3L, L)  bf16 layer-2 banded weights, dy taps stacked along K
    w3_ref  : (L, L)   bf16 layer-3 (1x1) block-diagonal weights
    b_ref   : (3, L)   f32  folded BN biases
    o_ref   : (M-4, L) f32  output rows (valid data rows extracted in wrapper)
    """
    M, L = xs_ref.shape
    M1 = M - 2
    M2 = M - 4

    xb = xs_ref[...].astype(jnp.bfloat16)                      # (M, L)

    # ---- layer1: 3x3 conv as one K=3L matmul over three dy-shifted slabs ----
    xcat = jnp.concatenate([xb[0:M1, :], xb[1:M1 + 1, :], xb[2:M1 + 2, :]],
                           axis=1)                             # (M1, 3L)
    a1 = jnp.dot(xcat, w1_ref[...], preferred_element_type=jnp.float32)
    a1 = jnp.maximum(a1 + b_ref[0:1, :], 0.0) * mask_ref[...]  # zero pad ring
    a1 = a1.astype(jnp.bfloat16)                               # (M1, L)

    # ---- layer2: 3x3 conv, same fused formulation ---------------------------
    acat = jnp.concatenate([a1[0:M2, :], a1[1:M2 + 1, :], a1[2:M2 + 2, :]],
                           axis=1)                             # (M2, 3L)
    a2 = jnp.dot(acat, w2_ref[...], preferred_element_type=jnp.float32)
    a2 = jnp.maximum(a2 + b_ref[1:2, :], 0.0).astype(jnp.bfloat16)

    # ---- layer3: 1x1 conv ----------------------------------------------------
    a3 = jnp.dot(a2, w3_ref[...], preferred_element_type=jnp.float32)
    x4 = jnp.maximum(a3 + b_ref[2:3, :], 0.0)                  # (M2, L)

    # ---- residual: x5 = x1 + x4 (aligned f32 read) ---------------------------
    o_ref[...] = (xres_ref[...] + x4).astype(o_ref.dtype)


# --------------------------------------------------------------------------- #
# Weight preparation: BN fold + banded / block-diagonal / lane-packed matrices
# --------------------------------------------------------------------------- #
def _band_weights_3x3(w, scale, W):
    """w: (Cout, Cin, 3, 3), scale: (Cout,). Returns (3, W*C, W*C) per-dy bands
    encoding the dx shifts and zero padding along W."""
    C = w.shape[0]
    k = jnp.transpose(w * scale[:, None, None, None], (2, 3, 1, 0))   # (3,3,Ci,Co)
    bands = []
    for dy in range(3):
        band = jnp.zeros((W * C, W * C), jnp.float32)
        for dx in range(3):
            band = band + jnp.kron(jnp.eye(W, k=1 - dx, dtype=jnp.float32),
                                   k[dy, dx])
        bands.append(band)
    return jnp.stack(bands)


def _fused_banded_3x3(w, scale, W, G):
    """(3L, L) weights: dy taps stacked along K, G lane groups block-diagonal."""
    bands = _band_weights_3x3(w, scale, W)                            # (3, WC, WC)
    eye_g = jnp.eye(G, dtype=jnp.float32)
    return jnp.concatenate([jnp.kron(eye_g, bands[dy]) for dy in range(3)],
                           axis=0)


def _packed_1x1(w, scale, W, G):
    """w: (Cout, Cin, 1, 1), scale: (Cout,). Returns (L, L) block-diagonal."""
    k = jnp.transpose(w[:, :, 0, 0] * scale[:, None], (1, 0))         # (Ci, Co)
    return jnp.kron(jnp.eye(W * G, dtype=jnp.float32), k)


# --------------------------------------------------------------------------- #
# Wrapper
# --------------------------------------------------------------------------- #
def basic_res_block(x_nchw, w1, w2, w3, s1, b1, s2, b2, s3, b3):
    """x_nchw: (N, C, H, W) f32 (PyTorch layout). Returns (N, C, H, W)."""
    N, C, H, W = x_nchw.shape
    WC = W * C

    # Lane packing factor: put G images side by side so the lane dim is 128.
    G = 128 // WC if (WC <= 128 and 128 % WC == 0) else 1
    L = G * WC

    # NCHW -> (N, H, W*C) rows, pad batch to a multiple of G, pack lanes.
    x_rows = jnp.transpose(x_nchw, (0, 2, 3, 1)).reshape(N, H, WC)
    x_rows = x_rows.astype(jnp.float32)
    Npad = -(-N // G) * G
    if Npad != N:
        x_rows = jnp.concatenate(
            [x_rows, jnp.zeros((Npad - N, H, WC), jnp.float32)], axis=0)
    NG = Npad // G
    xg = jnp.transpose(x_rows.reshape(NG, G, H, WC), (0, 2, 1, 3))
    xg = xg.reshape(NG, H, L)                                          # (NG, H, L)

    # Per-group row slab (8-aligned stride); data at rows [2, 2+H).
    Hp = ((H + 4 + 7) // 8) * 8

    # Groups per grid step: fold batch into matmul M, keep >=2 steps if possible.
    NB = max(1, min(max(1, 256 // Hp), (NG + 1) // 2))
    S = -(-NG // NB)
    NGp = S * NB
    if NGp != NG:
        xg = jnp.concatenate([xg, jnp.zeros((NGp - NG, H, L), jnp.float32)],
                             axis=0)

    M = NB * Hp          # conv-chain input rows per grid step
    M1 = M - 2           # layer-1 extended rows
    M2 = M - 4           # layer-2/3 / output rows

    # Conv-chain input: [2 zero rows | data | zeros] per group.
    xs = jnp.zeros((NGp, Hp, L), jnp.float32).at[:, 2:2 + H, :].set(xg)
    xs = xs.reshape(S, M, L)

    # Residual input laid out so data rows coincide with output rows (aligned).
    xres = jnp.zeros((NGp, Hp, L), jnp.float32).at[:, :H, :].set(xg)
    xres = xres.reshape(S, M, L)[:, :M2, :]

    # Layer-1 row mask: 1 on valid layer-1 output rows, 0 on pad ring / junk.
    ridx = jnp.arange(M1) % Hp
    mask = jnp.broadcast_to(((ridx >= 1) & (ridx <= H))[:, None],
                            (M1, L)).astype(jnp.float32)

    # BN-folded, banded, lane-packed weights (resident in VMEM across steps).
    w1f = _fused_banded_3x3(w1, s1, W, G).astype(jnp.bfloat16)         # (3L, L)
    w2f = _fused_banded_3x3(w2, s2, W, G).astype(jnp.bfloat16)         # (3L, L)
    w3f = _packed_1x1(w3, s3, W, G).astype(jnp.bfloat16)               # (L, L)
    biases = jnp.stack([jnp.tile(b1, W * G), jnp.tile(b2, W * G),
                        jnp.tile(b3, W * G)]).astype(jnp.float32)      # (3, L)

    out = pl.pallas_call(
        resblock_kernel,
        out_shape=jax.ShapeDtypeStruct((S, M2, L), jnp.float32),
        grid=(S,),
        in_specs=[
            pl.BlockSpec((None, M, L), lambda s: (s, 0, 0)),    # xs (per step)
            pl.BlockSpec((None, M2, L), lambda s: (s, 0, 0)),   # xres (per step)
            pl.BlockSpec((M1, L), lambda s: (0, 0)),            # mask (resident)
            pl.BlockSpec((3 * L, L), lambda s: (0, 0)),         # w1   (resident)
            pl.BlockSpec((3 * L, L), lambda s: (0, 0)),         # w2   (resident)
            pl.BlockSpec((L, L), lambda s: (0, 0)),             # w3   (resident)
            pl.BlockSpec((3, L), lambda s: (0, 0)),             # bias (resident)
        ],
        out_specs=pl.BlockSpec((None, M2, L), lambda s: (s, 0, 0)),
        compiler_params=pltpu.CompilerParams(
            dimension_semantics=("parallel",)),
    )(xs, xres, mask, w1f, w2f, w3f, biases)

    # Extract valid rows: per group the first H rows of its Hp-row window.
    out = jnp.pad(out, ((0, 0), (0, M - M2), (0, 0)))
    out = out.reshape(S, NB, Hp, L)[:, :, :H, :].reshape(NGp, H, L)[:NG]
    out = jnp.transpose(out.reshape(NG, H, G, WC), (0, 2, 1, 3))
    out = out.reshape(Npad, H, WC)[:N].reshape(N, H, W, C)
    return jnp.transpose(out, (0, 3, 1, 2))                            # -> NCHW


# --------------------------------------------------------------------------- #
# Reference (pure JAX/XLA) and test harness
# --------------------------------------------------------------------------- #
def _fold_bn(gamma, beta, running_mean, running_var, eps=1e-5):
    scale = gamma / jnp.sqrt(running_var + eps)
    bias = beta - running_mean * scale
    return scale, bias


def _ref_forward(x, w1, w2, w3, s1, b1, s2, b2, s3, b3):
    def conv(x, w, pad):
        return lax.conv_general_dilated(
            x, w, window_strides=(1, 1), padding=[(pad, pad), (pad, pad)],
            dimension_numbers=("NCHW", "OIHW", "NCHW"),
            precision=lax.Precision.HIGHEST)

    def bn_relu(y, s, b):
        return jnp.maximum(y * s[None, :, None, None] + b[None, :, None, None],
                           0.0)

    x2 = bn_relu(conv(x, w1, 1), s1, b1)
    x3 = bn_relu(conv(x2, w2, 1), s2, b2)
    x4 = bn_relu(conv(x3, w3, 0), s3, b3)
    return x + x4


if __name__ == "__main__":
    N, C, H, W = 2, 4, 16, 16
    keys = jax.random.split(jax.random.PRNGKey(0), 8)

    x = jax.random.normal(keys[0], (N, C, H, W), jnp.float32)

    # Conv weights (PyTorch layout Cout, Cin, kH, kW), bias=False in BasicConv.
    w1 = jax.random.normal(keys[1], (C, C, 3, 3), jnp.float32) * 0.1
    w2 = jax.random.normal(keys[2], (C, C, 3, 3), jnp.float32) * 0.1
    w3 = jax.random.normal(keys[3], (C, C, 1, 1), jnp.float32) * 0.1

    # BatchNorm2d eval-mode parameters (non-trivial to exercise the BN fold).
    def bn_params(k):
        ka, kb, kc, kd = jax.random.split(k, 4)
        gamma = 1.0 + 0.1 * jax.random.normal(ka, (C,), jnp.float32)
        beta = 0.1 * jax.random.normal(kb, (C,), jnp.float32)
        mean = 0.1 * jax.random.normal(kc, (C,), jnp.float32)
        var = jax.random.uniform(kd, (C,), jnp.float32, minval=0.5, maxval=1.5)
        return _fold_bn(gamma, beta, mean, var)

    s1, b1 = bn_params(keys[4])
    s2, b2 = bn_params(keys[5])
    s3, b3 = bn_params(keys[6])

    out = basic_res_block(x, w1, w2, w3, s1, b1, s2, b2, s3, b3)
    jax.block_until_ready(out)

    ref = _ref_forward(x, w1, w2, w3, s1, b1, s2, b2, s3, b3)
    err = float(jnp.max(jnp.abs(out - ref)))

    assert out.shape == (N, C, H, W)
    assert err < 5e-2, f"max abs error vs reference too large: {err}"
    print("KERNEL_OK")
</pallas_src>

<mosaic_0001>
module attributes {stable_mosaic.version = 11 : i64} {
  func.func @resblock_kernel(%arg0: i32, %arg1: memref<1x24x128xf32, #tpu.memory_space<vmem>>, %arg2: memref<1x20x128xf32, #tpu.memory_space<vmem>>, %arg3: memref<22x128xf32, #tpu.memory_space<vmem>>, %arg4: memref<384x128xbf16, #tpu.memory_space<vmem>>, %arg5: memref<384x128xbf16, #tpu.memory_space<vmem>>, %arg6: memref<128x128xbf16, #tpu.memory_space<vmem>>, %arg7: memref<3x128xf32, #tpu.memory_space<vmem>>, %arg8: memref<1x20x128xf32, #tpu.memory_space<vmem>>) attributes {dimension_semantics = [#tpu.dimension_semantics<parallel>], iteration_bounds = array<i64: 1>, scalar_prefetch = 0 : i64, scratch_operands = 0 : i64, tpu.core_type = #tpu.core_type<tc>, window_params = [{transform_indices = @transform_0, window_bounds = array<i64: 1, 24, 128>}, {transform_indices = @transform_1, window_bounds = array<i64: 1, 20, 128>}, {pipeline_mode = #tpu.pipeline_mode<synchronous>, transform_indices = @transform_2, window_bounds = array<i64: 22, 128>}, {pipeline_mode = #tpu.pipeline_mode<synchronous>, transform_indices = @transform_3, window_bounds = array<i64: 384, 128>}, {pipeline_mode = #tpu.pipeline_mode<synchronous>, transform_indices = @transform_4, window_bounds = array<i64: 384, 128>}, {pipeline_mode = #tpu.pipeline_mode<synchronous>, transform_indices = @transform_5, window_bounds = array<i64: 128, 128>}, {pipeline_mode = #tpu.pipeline_mode<synchronous>, transform_indices = @transform_6, window_bounds = array<i64: 3, 128>}, {transform_indices = @transform_7, window_bounds = array<i64: 1, 20, 128>}]} {
    %c0 = arith.constant 0 : index
    %c0_0 = arith.constant 0 : index
    %c0_1 = arith.constant 0 : index
    %0 = vector.load %arg1[%c0, %c0_0, %c0_1] : memref<1x24x128xf32, #tpu.memory_space<vmem>>, vector<1x24x128xf32>
    %1 = vector.shape_cast %0 : vector<1x24x128xf32> to vector<24x128xf32>
    %2 = arith.truncf %1 : vector<24x128xf32> to vector<24x128xbf16>
    %3 = vector.extract_strided_slice %2 {offsets = [0, 0], sizes = [22, 128], strides = [1, 1]} : vector<24x128xbf16> to vector<22x128xbf16>
    %4 = vector.extract_strided_slice %2 {offsets = [1, 0], sizes = [22, 128], strides = [1, 1]} : vector<24x128xbf16> to vector<22x128xbf16>
    %5 = vector.extract_strided_slice %2 {offsets = [2, 0], sizes = [22, 128], strides = [1, 1]} : vector<24x128xbf16> to vector<22x128xbf16>
    %6 = tpu.concatenate %3, %4, %5 in 1 : vector<22x128xbf16>, vector<22x128xbf16>, vector<22x128xbf16> -> vector<22x384xbf16>
    %c0_2 = arith.constant 0 : index
    %c0_3 = arith.constant 0 : index
    %7 = vector.load %arg4[%c0_2, %c0_3] : memref<384x128xbf16, #tpu.memory_space<vmem>>, vector<384x128xbf16>
    %cst = arith.constant dense<0.000000e+00> : vector<22x128xf32>
    %8 = tpu.matmul %6, %7, %cst {dimension_numbers = #tpu.dot_dimension_numbers<[1], [0], [0], [1], [0, 0, 1, 1], [], []>} : vector<22x384xbf16>, vector<384x128xbf16>, vector<22x128xf32> -> vector<22x128xf32>
    %c0_4 = arith.constant 0 : index
    %c0_5 = arith.constant 0 : index
    %9 = vector.load %arg7[%c0_4, %c0_5] : memref<3x128xf32, #tpu.memory_space<vmem>>, vector<1x128xf32>
    %10 = vector.broadcast %9 : vector<1x128xf32> to vector<22x128xf32>
    %11 = arith.addf %8, %10 : vector<22x128xf32>
    %cst_6 = arith.constant 0.000000e+00 : f32
    %12 = vector.broadcast %cst_6 : f32 to vector<22x128xf32>
    %13 = arith.maximumf %11, %12 : vector<22x128xf32>
    %c0_7 = arith.constant 0 : index
    %c0_8 = arith.constant 0 : index
    %14 = vector.load %arg3[%c0_7, %c0_8] : memref<22x128xf32, #tpu.memory_space<vmem>>, vector<22x128xf32>
    %15 = arith.mulf %13, %14 : vector<22x128xf32>
    %16 = arith.truncf %15 : vector<22x128xf32> to vector<22x128xbf16>
    %17 = vector.extract_strided_slice %16 {offsets = [0, 0], sizes = [20, 128], strides = [1, 1]} : vector<22x128xbf16> to vector<20x128xbf16>
    %18 = vector.extract_strided_slice %16 {offsets = [1, 0], sizes = [20, 128], strides = [1, 1]} : vector<22x128xbf16> to vector<20x128xbf16>
    %19 = vector.extract_strided_slice %16 {offsets = [2, 0], sizes = [20, 128], strides = [1, 1]} : vector<22x128xbf16> to vector<20x128xbf16>
    %20 = tpu.concatenate %17, %18, %19 in 1 : vector<20x128xbf16>, vector<20x128xbf16>, vector<20x128xbf16> -> vector<20x384xbf16>
    %c0_9 = arith.constant 0 : index
    %c0_10 = arith.constant 0 : index
    %21 = vector.load %arg5[%c0_9, %c0_10] : memref<384x128xbf16, #tpu.memory_space<vmem>>, vector<384x128xbf16>
    %cst_11 = arith.constant dense<0.000000e+00> : vector<20x128xf32>
    %22 = tpu.matmul %20, %21, %cst_11 {dimension_numbers = #tpu.dot_dimension_numbers<[1], [0], [0], [1], [0, 0, 1, 1], [], []>} : vector<20x384xbf16>, vector<384x128xbf16>, vector<20x128xf32> -> vector<20x128xf32>
    %c1 = arith.constant 1 : index
    %c0_12 = arith.constant 0 : index
    %23 = vector.load %arg7[%c1, %c0_12] : memref<3x128xf32, #tpu.memory_space<vmem>>, vector<1x128xf32>
    %24 = vector.broadcast %23 : vector<1x128xf32> to vector<20x128xf32>
    %25 = arith.addf %22, %24 : vector<20x128xf32>
    %cst_13 = arith.constant 0.000000e+00 : f32
    %26 = vector.broadcast %cst_13 : f32 to vector<20x128xf32>
    %27 = arith.maximumf %25, %26 : vector<20x128xf32>
    %28 = arith.truncf %27 : vector<20x128xf32> to vector<20x128xbf16>
    %c0_14 = arith.constant 0 : index
    %c0_15 = arith.constant 0 : index
    %29 = vector.load %arg6[%c0_14, %c0_15] : memref<128x128xbf16, #tpu.memory_space<vmem>>, vector<128x128xbf16>
    %cst_16 = arith.constant dense<0.000000e+00> : vector<20x128xf32>
    %30 = tpu.matmul %28, %29, %cst_16 {dimension_numbers = #tpu.dot_dimension_numbers<[1], [0], [0], [1], [0, 0, 1, 1], [], []>} : vector<20x128xbf16>, vector<128x128xbf16>, vector<20x128xf32> -> vector<20x128xf32>
    %c2 = arith.constant 2 : index
    %c0_17 = arith.constant 0 : index
    %31 = vector.load %arg7[%c2, %c0_17] : memref<3x128xf32, #tpu.memory_space<vmem>>, vector<1x128xf32>
    %32 = vector.broadcast %31 : vector<1x128xf32> to vector<20x128xf32>
    %33 = arith.addf %30, %32 : vector<20x128xf32>
    %cst_18 = arith.constant 0.000000e+00 : f32
    %34 = vector.broadcast %cst_18 : f32 to vector<20x128xf32>
    %35 = arith.maximumf %33, %34 : vector<20x128xf32>
    %c0_19 = arith.constant 0 : index
    %c0_20 = arith.constant 0 : index
    %c0_21 = arith.constant 0 : index
    %36 = vector.load %arg2[%c0_19, %c0_20, %c0_21] : memref<1x20x128xf32, #tpu.memory_space<vmem>>, vector<1x20x128xf32>
    %37 = vector.shape_cast %36 : vector<1x20x128xf32> to vector<20x128xf32>
    %38 = arith.addf %37, %35 : vector<20x128xf32>
    %c0_22 = arith.constant 0 : index
    %c0_23 = arith.constant 0 : index
    %c0_24 = arith.constant 0 : index
    %39 = vector.load %arg8[%c0_22, %c0_23, %c0_24] : memref<1x20x128xf32, #tpu.memory_space<vmem>>, vector<1x20x128xf32>
    %40 = vector.shape_cast %39 : vector<1x20x128xf32> to vector<20x128xf32>
    %41 = vector.shape_cast %38 : vector<20x128xf32> to vector<1x20x128xf32>
    tpu.vector_store %arg8[%c0_22, %c0_23, %c0_24], %41 {strides = array<i32>} : memref<1x20x128xf32, #tpu.memory_space<vmem>>, vector<1x20x128xf32>,
    return
  }
  func.func @transform_0(%arg0: i32) -> (i32, i32, i32) {
    %c0_i32 = arith.constant 0 : i32
    %c0_i32_0 = arith.constant 0 : i32
    %c0_i32_1 = arith.constant 0 : i32
    return %arg0, %c0_i32, %c0_i32_0 : i32, i32, i32
  }
  func.func @transform_1(%arg0: i32) -> (i32, i32, i32) {
    %c0_i32 = arith.constant 0 : i32
    %c0_i32_0 = arith.constant 0 : i32
    %c0_i32_1 = arith.constant 0 : i32
    return %arg0, %c0_i32, %c0_i32_0 : i32, i32, i32
  }
  func.func @transform_2(%arg0: i32) -> (i32, i32) {
    %c0_i32 = arith.constant 0 : i32
    %c0_i32_0 = arith.constant 0 : i32
    %c0_i32_1 = arith.constant 0 : i32
    return %c0_i32, %c0_i32_0 : i32, i32
  }
  func.func @transform_3(%arg0: i32) -> (i32, i32) {
    %c0_i32 = arith.constant 0 : i32
    %c0_i32_0 = arith.constant 0 : i32
    %c0_i32_1 = arith.constant 0 : i32
    return %c0_i32, %c0_i32_0 : i32, i32
  }
  func.func @transform_4(%arg0: i32) -> (i32, i32) {
    %c0_i32 = arith.constant 0 : i32
    %c0_i32_0 = arith.constant 0 : i32
    %c0_i32_1 = arith.constant 0 : i32
    return %c0_i32, %c0_i32_0 : i32, i32
  }
  func.func @transform_5(%arg0: i32) -> (i32, i32) {
    %c0_i32 = arith.constant 0 : i32
    %c0_i32_0 = arith.constant 0 : i32
    %c0_i32_1 = arith.constant 0 : i32
    return %c0_i32, %c0_i32_0 : i32, i32
  }
  func.func @transform_6(%arg0: i32) -> (i32, i32) {
    %c0_i32 = arith.constant 0 : i32
    %c0_i32_0 = arith.constant 0 : i32
    %c0_i32_1 = arith.constant 0 : i32
    return %c0_i32, %c0_i32_0 : i32, i32
  }
  func.func @transform_7(%arg0: i32) -> (i32, i32, i32) {
    %c0_i32 = arith.constant 0 : i32
    %c0_i32_0 = arith.constant 0 : i32
    %c0_i32_1 = arith.constant 0 : i32
    return %arg0, %c0_i32, %c0_i32_0 : i32, i32, i32
  }
}

</mosaic_0001>

<llo_original>
// kernel: tpu_custom_call.1
$region0: #{tpu_custom_call.1}
  #allocation0 [shape = 'u32[]', space=smem, size = 0x4, offset = 0x4, fixed_abs, tag = 'smem constant byte address 0x4 - core index']
  #allocation1 [shape = 'u32[144,128]{1,0:T(1,128)}', space=vmem, size = 0x12000, scoped, tag = 'internal scratch']
  %s0 = inlined_call_operand.vmem [shape: f32[1,24,128], index: 0, kind: input, shape index: {}]
  %s1 = inlined_call_operand.vmem [shape: f32[1,20,128], index: 1, kind: input, shape index: {}]
  %s2 = inlined_call_operand.hbm [shape: f32[22,128], index: 2, kind: input, shape index: {}]
  %s3 = inlined_call_operand.hbm [shape: bf16[384,128], index: 3, kind: input, shape index: {}]
  %s4 = inlined_call_operand.hbm [shape: bf16[384,128], index: 4, kind: input, shape index: {}]
  %s5 = inlined_call_operand.hbm [shape: bf16[128,128], index: 5, kind: input, shape index: {}]
  %s6 = inlined_call_operand.vmem [shape: f32[3,128], index: 6, kind: input, shape index: {}]
  %s7 = inlined_call_operand.vmem [shape: f32[1,20,128], index: 7, kind: output, shape index: {}]
  %s8 = sld [smem:[#allocation0]]
  $region54: #{tpu_custom_call.1} parent=0
    _
  %s10 = ssub.s32 1, %s8
  %s11 = scalar_select 0, %s10, %s8
  $region1: #{tpu_custom_call.1} parent=0
    #allocation2 [shape = 'u8[12288]{0}', space=vmem, size = 0x3000, scoped, tag = 'input window, operand 2, single buffered']
    #allocation3 [shape = 's32[1]{0}', space=sflag, size = 0x4, scoped, tag = 'scoped memory for tpu_custom_call.1']
    #allocation4 [shape = 'u8[98304]{0}', space=vmem, size = 0x18000, scoped, tag = 'input window, operand 3, single buffered']
    #allocation5 [shape = 's32[1]{0}', space=sflag, size = 0x4, scoped, tag = 'scoped memory for tpu_custom_call.1']
    #allocation6 [shape = 'u8[98304]{0}', space=vmem, size = 0x18000, scoped, tag = 'input window, operand 4, single buffered']
    #allocation7 [shape = 'u8[32768]{0}', space=vmem, size = 0x8000, scoped, tag = 'input window, operand 5, single buffered']
    #allocation8 [shape = 's32[1]{0}', space=sflag, size = 0x4, scoped, tag = 'scoped memory for tpu_custom_call.1']
    %12 = vsyncpa [#allocation3], 0
    %13 = vsyncpa [#allocation5], 0
    %14 = vsyncpa [#allocation8], 0
    // Predicated region
    $region2: #{tpu_custom_call.1} parent=1 // pred_check
      _
    $region3: #{tpu_custom_call.1} parent=1 // pred_check_branch
      %16 = sbr.rel (0) target = $region5
    $region4: #{tpu_custom_call.1} parent=1 // pred_region
      _
    $region5: #{tpu_custom_call.1} parent=1 // pred_fallthru
      _
    // Predicated region
    $region6: #{tpu_custom_call.1} parent=1 // pred_check
      _
    $region7: #{tpu_custom_call.1} parent=1 // pred_check_branch
      %18 = sbr.rel (0) target = $region9
    $region8: #{tpu_custom_call.1} parent=1 // pred_region
      _
    $region9: #{tpu_custom_call.1} parent=1 // pred_fallthru
      _
    // Predicated region
    $region10: #{tpu_custom_call.1} parent=1 // pred_check
      _
    $region11: #{tpu_custom_call.1} parent=1 // pred_check_branch
      %20 = sbr.rel (0) target = $region13
    $region12: #{tpu_custom_call.1} parent=1 // pred_region
      %s22 = ssub.s32 384, 384
      %23 = vsyncadd [#allocation3], %s22
      %s24 = sshll.u32 [#allocation2], 4
      %s25 = int_to_ptr.vmem [resolvable:$true] %s24
      %30 = dma.hbm_to_vmem [thread:$0]  %s2, 384, %s25, [#allocation3], 128, 128, 8
    $region13: #{tpu_custom_call.1} parent=1 // pred_fallthru
      _
    // Predicated region
    $region14: #{tpu_custom_call.1} parent=1 // pred_check
      _
    $region15: #{tpu_custom_call.1} parent=1 // pred_check_branch
      %32 = sbr.rel (0) target = $region17
    $region16: #{tpu_custom_call.1} parent=1 // pred_region
      %s34 = ssub.s32 3072, 3072
      %35 = vsyncadd [#allocation5], %s34
      %s36 = sshll.u32 [#allocation4], 4
      %s37 = int_to_ptr.vmem [resolvable:$true] %s36
      %42 = dma.hbm_to_vmem [thread:$0]  %s3, 3072, %s37, [#allocation5], 64, 64, 4
    $region17: #{tpu_custom_call.1} parent=1 // pred_fallthru
      _
    // Predicated region
    $region18: #{tpu_custom_call.1} parent=1 // pred_check
      _
    $region19: #{tpu_custom_call.1} parent=1 // pred_check_branch
      %44 = sbr.rel (0) target = $region21
    $region20: #{tpu_custom_call.1} parent=1 // pred_region
      %s46 = ssub.s32 3072, 3072
      %47 = vsyncadd [#allocation5], %s46
      %s48 = sshll.u32 [#allocation6], 4
      %s49 = int_to_ptr.vmem [resolvable:$true] %s48
      %54 = dma.hbm_to_vmem [thread:$0]  %s4, 3072, %s49, [#allocation5], 64, 64, 4
    $region21: #{tpu_custom_call.1} parent=1 // pred_fallthru
      _
    // Predicated region
    $region22: #{tpu_custom_call.1} parent=1 // pred_check
      _
    $region23: #{tpu_custom_call.1} parent=1 // pred_check_branch
      %56 = sbr.rel (0) target = $region25
    $region24: #{tpu_custom_call.1} parent=1 // pred_region
      %s58 = ssub.s32 1024, 1024
      %59 = vsyncadd [#allocation8], %s58
      %s60 = sshll.u32 [#allocation7], 4
      %s61 = int_to_ptr.vmem [resolvable:$true] %s60
      %66 = dma.hbm_to_vmem [thread:$0]  %s5, 1024, %s61, [#allocation8], 64, 64, 4
    $region25: #{tpu_custom_call.1} parent=1 // pred_fallthru
      _
    // Predicated region
    $region26: #{tpu_custom_call.1} parent=1 // pred_check
      _
    $region27: #{tpu_custom_call.1} parent=1 // pred_check_branch
      %68 = sbr.rel (0) target = $region29
    $region28: #{tpu_custom_call.1} parent=1 // pred_region
      _
    $region29: #{tpu_custom_call.1} parent=1 // pred_fallthru
      _
    // Predicated region
    $region30: #{tpu_custom_call.1} parent=1 // pred_check
      _
    $region31: #{tpu_custom_call.1} parent=1 // pred_check_branch
      %70 = sbr.rel (0) target = $region33
    $region32: #{tpu_custom_call.1} parent=1 // pred_region
      %71 = dma.done [#allocation3], 384
    $region33: #{tpu_custom_call.1} parent=1 // pred_fallthru
      _
    // Predicated region
    $region34: #{tpu_custom_call.1} parent=1 // pred_check
      _
    $region35: #{tpu_custom_call.1} parent=1 // pred_check_branch
      %73 = sbr.rel (0) target = $region37
    $region36: #{tpu_custom_call.1} parent=1 // pred_region
      %74 = dma.done [#allocation5], 3072
    $region37: #{tpu_custom_call.1} parent=1 // pred_fallthru
      _
    // Predicated region
    $region38: #{tpu_custom_call.1} parent=1 // pred_check
      _
    $region39: #{tpu_custom_call.1} parent=1 // pred_check_branch
      %76 = sbr.rel (0) target = $region41
    $region40: #{tpu_custom_call.1} parent=1 // pred_region
      %77 = dma.done [#allocation5], 3072
    $region41: #{tpu_custom_call.1} parent=1 // pred_fallthru
      _
    // Predicated region
    $region42: #{tpu_custom_call.1} parent=1 // pred_check
      _
    $region43: #{tpu_custom_call.1} parent=1 // pred_check_branch
      %79 = sbr.rel (0) target = $region45
    $region44: #{tpu_custom_call.1} parent=1 // pred_region
      %80 = dma.done [#allocation8], 1024
    $region45: #{tpu_custom_call.1} parent=1 // pred_fallthru
      _
    %v82 = vld [vmem:[%s0] sm:$0xff]
    %v83 = vld [vmem:[%s0 + $0x8] sm:$0xff]
    %v84 = vld [vmem:[%s0 + $0x10] sm:$0xff]
    %v85 = vpack.c.bf16 %v83, %v82
    %v86 = vpack.c.bf16 %v84, %v84
    %vm87 = vsmask.f32 7424
    %v89 = vshrl.u32 %v85, 16
    %v91 = vshll.u32 %v85, 16
    %v93 = vrot.slane %v91, 1
    %v94 = vor.u32 %v89, %v93
    %v96 = vshll.u32 %v86, 16
    %v98 = vrot.slane %v96, 1
    %v99 = vsel %vm87, %v94, %v98
    %v100 = vshrl.u32 %v86, 16
    %v102 = vor.u32 %v100, %v98
    %vm107 = vcmask 1046528
    %v108 = vrot.slane %v85, 1
    %v109 = vrot.slane %v86, 1
    %v110 = vsel %vm107, %v108, %v109
    %v113 = vld [vmem:[#allocation4] sm:$0xf]
    %v114 = vld [vmem:[#allocation4 + $0x4] sm:$0xf]
    %v115 = vld [vmem:[#allocation4 + $0x8] sm:$0xf]
    %v116 = vld [vmem:[#allocation4 + $0xc] sm:$0xf]
    %v117 = vld [vmem:[#allocation4 + $0x10] sm:$0xf]
    %v118 = vld [vmem:[#allocation4 + $0x14] sm:$0xf]
    %v119 = vld [vmem:[#allocation4 + $0x18] sm:$0xf]
    %v120 = vld [vmem:[#allocation4 + $0x1c] sm:$0xf]
    %v121 = vld [vmem:[#allocation4 + $0x20] sm:$0xf]
    %v122 = vld [vmem:[#allocation4 + $0x24] sm:$0xf]
    %v123 = vld [vmem:[#allocation4 + $0x28] sm:$0xf]
    %v124 = vld [vmem:[#allocation4 + $0x2c] sm:$0xf]
    %v125 = vld [vmem:[#allocation4 + $0x30] sm:$0xf]
    %v126 = vld [vmem:[#allocation4 + $0x34] sm:$0xf]
    %v127 = vld [vmem:[#allocation4 + $0x38] sm:$0xf]
    %v128 = vld [vmem:[#allocation4 + $0x3c] sm:$0xf]
    %v129 = vld [vmem:[#allocation4 + $0x40] sm:$0xf]
    %v130 = vld [vmem:[#allocation4 + $0x44] sm:$0xf]
    %v131 = vld [vmem:[#allocation4 + $0x48] sm:$0xf]
    %v132 = vld [vmem:[#allocation4 + $0x4c] sm:$0xf]
    %v133 = vld [vmem:[#allocation4 + $0x50] sm:$0xf]
    %v134 = vld [vmem:[#allocation4 + $0x54] sm:$0xf]
    %v135 = vld [vmem:[#allocation4 + $0x58] sm:$0xf]
    %v136 = vld [vmem:[#allocation4 + $0x5c] sm:$0xf]
    %v137 = vld [vmem:[#allocation4 + $0x60] sm:$0xf]
    %v138 = vld [vmem:[#allocation4 + $0x64] sm:$0xf]
    %v139 = vld [vmem:[#allocation4 + $0x68] sm:$0xf]
    %v140 = vld [vmem:[#allocation4 + $0x6c] sm:$0xf]
    %v141 = vld [vmem:[#allocation4 + $0x70] sm:$0xf]
    %v142 = vld [vmem:[#allocation4 + $0x74] sm:$0xf]
    %v143 = vld [vmem:[#allocation4 + $0x78] sm:$0xf]
    %v144 = vld [vmem:[#allocation4 + $0x7c] sm:$0xf]
    %v145 = vld [vmem:[#allocation4 + $0x80] sm:$0xf]
    %v146 = vld [vmem:[#allocation4 + $0x84] sm:$0xf]
    %v147 = vld [vmem:[#allocation4 + $0x88] sm:$0xf]
    %v148 = vld [vmem:[#allocation4 + $0x8c] sm:$0xf]
    %v149 = vld [vmem:[#allocation4 + $0x90] sm:$0xf]
    %v150 = vld [vmem:[#allocation4 + $0x94] sm:$0xf]
    %v151 = vld [vmem:[#allocation4 + $0x98] sm:$0xf]
    %v152 = vld [vmem:[#allocation4 + $0x9c] sm:$0xf]
    %v153 = vld [vmem:[#allocation4 + $0xa0] sm:$0xf]
    %v154 = vld [vmem:[#allocation4 + $0xa4] sm:$0xf]
    %v155 = vld [vmem:[#allocation4 + $0xa8] sm:$0xf]
    %v156 = vld [vmem:[#allocation4 + $0xac] sm:$0xf]
    %v157 = vld [vmem:[#allocation4 + $0xb0] sm:$0xf]
    %v158 = vld [vmem:[#allocation4 + $0xb4] sm:$0xf]
    %v159 = vld [vmem:[#allocation4 + $0xb8] sm:$0xf]
    %v160 = vld [vmem:[#allocation4 + $0xbc] sm:$0xf]
    %v161 = vld [vmem:[%s6] sm:$0x1]
    %v162 = vlaneseq
    %v163 = vshrl.u32 %v162, 7
    %v164 = vsub.s32 0, %v163
    %v165 = vrot.slane %v161, %v164
    %v214 = vunpack.c.l.b16 %v113
    %v215 = vunpack.c.l.b16 %v114
    %v216 = vunpack.c.l.b16 %v115
    %v217 = vunpack.c.l.b16 %v116
    %v218 = vunpack.c.l.b16 %v117
    %v219 = vunpack.c.l.b16 %v118
    %v220 = vunpack.c.l.b16 %v119
    %v221 = vunpack.c.l.b16 %v120
    %v222 = vunpack.c.l.b16 %v121
    %v223 = vunpack.c.l.b16 %v122
    %v224 = vunpack.c.l.b16 %v123
    %v225 = vunpack.c.l.b16 %v124
    %v226 = vunpack.c.l.b16 %v125
    %v227 = vunpack.c.l.b16 %v126
    %v228 = vunpack.c.l.b16 %v127
    %v229 = vunpack.c.l.b16 %v128
    %v230 = vunpack.c.l.b16 %v129
    %v231 = vunpack.c.l.b16 %v130
    %v232 = vunpack.c.l.b16 %v131
    %v233 = vunpack.c.l.b16 %v132
    %v234 = vunpack.c.l.b16 %v133
    %v235 = vunpack.c.l.b16 %v134
    %v236 = vunpack.c.l.b16 %v135
    %v237 = vunpack.c.l.b16 %v136
    %v238 = vunpack.c.l.b16 %v137
    %v239 = vunpack.c.l.b16 %v138
    %v240 = vunpack.c.l.b16 %v139
    %v241 = vunpack.c.l.b16 %v140
    %v242 = vunpack.c.l.b16 %v141
    %v243 = vunpack.c.l.b16 %v142
    %v244 = vunpack.c.l.b16 %v143
    %v245 = vunpack.c.l.b16 %v144
    %v246 = vunpack.c.l.b16 %v145
    %v247 = vunpack.c.l.b16 %v146
    %v248 = vunpack.c.l.b16 %v147
    %v249 = vunpack.c.l.b16 %v148
    %v250 = vunpack.c.l.b16 %v149
    %v251 = vunpack.c.l.b16 %v150
    %v252 = vunpack.c.l.b16 %v151
    %v253 = vunpack.c.l.b16 %v152
    %v254 = vunpack.c.l.b16 %v153
    %v255 = vunpack.c.l.b16 %v154
    %v256 = vunpack.c.l.b16 %v155
    %v257 = vunpack.c.l.b16 %v156
    %v258 = vunpack.c.l.b16 %v157
    %v259 = vunpack.c.l.b16 %v158
    %v260 = vunpack.c.l.b16 %v159
    %v261 = vunpack.c.l.b16 %v160
    %v262 = vpack.c.b16 %v215, %v214
    %v263 = vpack.c.b16 %v217, %v216
    %v264 = vpack.c.b16 %v219, %v218
    %v265 = vpack.c.b16 %v221, %v220
    %v266 = vpack.c.b16 %v223, %v222
    %v267 = vpack.c.b16 %v225, %v224
    %v268 = vpack.c.b16 %v227, %v226
    %v269 = vpack.c.b16 %v229, %v228
    %v270 = vpack.c.b16 %v231, %v230
    %v271 = vpack.c.b16 %v233, %v232
    %v272 = vpack.c.b16 %v235, %v234
    %v273 = vpack.c.b16 %v237, %v236
    %v274 = vpack.c.b16 %v239, %v238
    %v275 = vpack.c.b16 %v241, %v240
    %v276 = vpack.c.b16 %v243, %v242
    %v277 = vpack.c.b16 %v245, %v244
    %v278 = vpack.c.b16 %v247, %v246
    %v279 = vpack.c.b16 %v249, %v248
    %v280 = vpack.c.b16 %v251, %v250
    %v281 = vpack.c.b16 %v253, %v252
    %v282 = vpack.c.b16 %v255, %v254
    %v283 = vpack.c.b16 %v257, %v256
    %v284 = vpack.c.b16 %v259, %v258
    %v285 = vpack.c.b16 %v261, %v260
    %310 = vmatprep.subr.bf16.mxu0 0
    %311 = vmatpush1.bf16.msra.mxu0 %v269
    %312 = vmatprep.subr.bf16.mxu0 0
    %313 = vmatpush1.bf16.msra.mxu0 %v268
    %314 = vmatprep.subr.bf16.mxu0 0
    %315 = vmatpush1.bf16.msra.mxu0 %v267
    %316 = vmatprep.subr.bf16.mxu0 0
    %317 = vmatpush1.bf16.msra.mxu0 %v266
    %318 = vmatprep.subr.bf16.mxu0 0
    %319 = vmatpush1.bf16.msra.mxu0 %v265
    %320 = vmatprep.subr.bf16.mxu0 0
    %321 = vmatpush1.bf16.msra.mxu0 %v264
    %322 = vmatprep.subr.bf16.mxu0 0
    %323 = vmatpush1.bf16.msra.mxu0 %v263
    %324 = vmatprep.subr.bf16.mxu0 0
    %325 = vmatpush1.bf16.msra.mxu0 %v262
    %326 = vmatprep.subr.bf16.mxu0 0
    %327 = vmatpush2.bf16.msra.mxu0 %v277
    %328 = vmatprep.subr.bf16.mxu0 0
    %329 = vmatpush2.bf16.msra.mxu0 %v276
    %330 = vmatprep.subr.bf16.mxu0 0
    %331 = vmatpush2.bf16.msra.mxu0 %v275
    %332 = vmatprep.subr.bf16.mxu0 0
    %333 = vmatpush2.bf16.msra.mxu0 %v274
    %334 = vmatprep.subr.bf16.mxu0 0
    %335 = vmatpush2.bf16.msra.mxu0 %v273
    %336 = vmatprep.subr.bf16.mxu0 0
    %337 = vmatpush2.bf16.msra.mxu0 %v272
    %338 = vmatprep.subr.bf16.mxu0 0
    %339 = vmatpush2.bf16.msra.mxu0 %v271
    %340 = vmatprep.subr.bf16.mxu0 0
    %341 = vmatpush2.bf16.msra.mxu0 %v270
    %342 = vmatprep.mubr.bf16.mxu0 %v99
    %343 = vmatmul.mubr.bf16.gmra.mxu0 %v85
    %v344 = vpop.f32.mrf.mxu0
    %v345 = vadd.f32 %v165, %v344
    %v346 = vpop.f32.mrf.mxu0
    %v347 = vpop.f32.mrf.mxu0
    %v348 = vadd.f32 %v165, %v347
    %v349 = vpop.f32.mrf.mxu0
    %350 = vmatprep.mubr.bf16.mxu0 %v102
    %351 = vmatmul.mubr.bf16.gmra.mxu0 %v86
    %v352 = vpop.f32.mrf.mxu0
    %v353 = vadd.f32 %v165, %v352
    %v354 = vpop.f32.mrf.mxu0
    %v355 = vpop.f32.mrf.mxu0
    %v356 = vpop.f32.mrf.mxu0
    %357 = vdwg.mxu0
    %358 = vmatprep.subr.bf16.mxu0 0
    %359 = vmatpush1.bf16.msra.mxu0 %v285
    %360 = vmatprep.subr.bf16.mxu0 0
    %361 = vmatpush1.bf16.msra.mxu0 %v284
    %362 = vmatprep.subr.bf16.mxu0 0
    %363 = vmatpush1.bf16.msra.mxu0 %v283
    %364 = vmatprep.subr.bf16.mxu0 0
    %365 = vmatpush1.bf16.msra.mxu0 %v282
    %366 = vmatprep.subr.bf16.mxu0 0
    %367 = vmatpush1.bf16.msra.mxu0 %v281
    %368 = vmatprep.subr.bf16.mxu0 0
    %369 = vmatpush1.bf16.msra.mxu0 %v280
    %370 = vmatprep.subr.bf16.mxu0 0
    %371 = vmatpush1.bf16.msra.mxu0 %v279
    %372 = vmatprep.subr.bf16.mxu0 0
    %373 = vmatpush1.bf16.msra.mxu0 %v278
    %374 = vmatprep.subr.bf16.mxu0 0
    %375 = vmatpush2.bf16.msra.mxu0 0
    %376 = vmatprep.subr.bf16.mxu0 0
    %377 = vmatpush2.bf16.msra.mxu0 0
    %378 = vmatprep.subr.bf16.mxu0 0
    %379 = vmatpush2.bf16.msra.mxu0 0
    %380 = vmatprep.subr.bf16.mxu0 0
    %381 = vmatpush2.bf16.msra.mxu0 0
    %382 = vmatprep.subr.bf16.mxu0 0
    %383 = vmatpush2.bf16.msra.mxu0 0
    %384 = vmatprep.subr.bf16.mxu0 0
    %385 = vmatpush2.bf16.msra.mxu0 0
    %386 = vmatprep.subr.bf16.mxu0 0
    %387 = vmatpush2.bf16.msra.mxu0 0
    %388 = vmatprep.subr.bf16.mxu0 0
    %389 = vmatpush2.bf16.msra.mxu0 0
    %390 = vmatprep.mubr.bf16.mxu0 0
    %391 = vmatmul.mubr.bf16.gmra.mxu0 %v110
    %v392 = vpop.f32.mrf.mxu0
    %v393 = vadd.f32 %v345, %v392
    %v394 = vpop.f32.mrf.mxu0
    %v395 = vpop.f32.mrf.mxu0
    %v396 = vadd.f32 %v348, %v395
    %v397 = vpop.f32.mrf.mxu0
    %398 = vmatprep.mubr.bf16.mxu0 0
    %399 = vmatmul.mubr.bf16.gmra.mxu0 %v109
    %v400 = vpop.f32.mrf.mxu0
    %v401 = vadd.f32 %v353, %v400
    %v402 = vpop.f32.mrf.mxu0
    %v403 = vpop.f32.mrf.mxu0
    %v404 = vpop.f32.mrf.mxu0
    %405 = vdwg.mxu0
    %v406 = vmax.f32 %v393, 0.0
    %v407 = vmax.f32 %v396, 0.0
    %v408 = vmax.f32 %v401, 0.0
    %v409 = vld [vmem:[#allocation2] sm:$0xff]
    %v410 = vld [vmem:[#allocation2 + $0x8] sm:$0xff]
    %v411 = vld [vmem:[#allocation2 + $0x10] sm:$0x3f]
    %v412 = vmul.f32 %v406, %v409
    %v413 = vmul.f32 %v407, %v410
    %v414 = vmul.f32 %v408, %v411
    %v415 = vpack.c.bf16 %v413, %v412
    %v416 = vpack.c.bf16 %v414, %v414
    %v418 = vshrl.u32 %v415, 16
    %v420 = vshll.u32 %v415, 16
    %v422 = vrot.slane %v420, 1
    %v423 = vor.u32 %v418, %v422
    %v425 = vshll.u32 %v416, 16
    %v427 = vrot.slane %v425, 1
    %v428 = vsel %vm87, %v423, %v427
    %v429 = vshrl.u32 %v416, 16
    %v431 = vor.u32 %v429, %v427
    %v436 = vrot.slane %v415, 1
    %v437 = vrot.slane %v416, 1
    %v438 = vsel %vm107, %v436, %v437
    %v441 = vld [vmem:[#allocation6] sm:$0xf]
    %v442 = vld [vmem:[#allocation6 + $0x4] sm:$0xf]
    %v443 = vld [vmem:[#allocation6 + $0x8] sm:$0xf]
    %v444 = vld [vmem:[#allocation6 + $0xc] sm:$0xf]
    %v445 = vld [vmem:[#allocation6 + $0x10] sm:$0xf]
    %v446 = vld [vmem:[#allocation6 + $0x14] sm:$0xf]
    %v447 = vld [vmem:[#allocation6 + $0x18] sm:$0xf]
    %v448 = vld [vmem:[#allocation6 + $0x1c] sm:$0xf]
    %v449 = vld [vmem:[#allocation6 + $0x20] sm:$0xf]
    %v450 = vld [vmem:[#allocation6 + $0x24] sm:$0xf]
    %v451 = vld [vmem:[#allocation6 + $0x28] sm:$0xf]
    %v452 = vld [vmem:[#allocation6 + $0x2c] sm:$0xf]
    %v453 = vld [vmem:[#allocation6 + $0x30] sm:$0xf]
    %v454 = vld [vmem:[#allocation6 + $0x34] sm:$0xf]
    %v455 = vld [vmem:[#allocation6 + $0x38] sm:$0xf]
    %v456 = vld [vmem:[#allocation6 + $0x3c] sm:$0xf]
    %v457 = vld [vmem:[#allocation6 + $0x40] sm:$0xf]
    %v458 = vld [vmem:[#allocation6 + $0x44] sm:$0xf]
    %v459 = vld [vmem:[#allocation6 + $0x48] sm:$0xf]
    %v460 = vld [vmem:[#allocation6 + $0x4c] sm:$0xf]
    %v461 = vld [vmem:[#allocation6 + $0x50] sm:$0xf]
    %v462 = vld [vmem:[#allocation6 + $0x54] sm:$0xf]
    %v463 = vld [vmem:[#allocation6 + $0x58] sm:$0xf]
    %v464 = vld [vmem:[#allocation6 + $0x5c] sm:$0xf]
    %v465 = vld [vmem:[#allocation6 + $0x60] sm:$0xf]
    %v466 = vld [vmem:[#allocation6 + $0x64] sm:$0xf]
    %v467 = vld [vmem:[#allocation6 + $0x68] sm:$0xf]
    %v468 = vld [vmem:[#allocation6 + $0x6c] sm:$0xf]
    %v469 = vld [vmem:[#allocation6 + $0x70] sm:$0xf]
    %v470 = vld [vmem:[#allocation6 + $0x74] sm:$0xf]
    %v471 = vld [vmem:[#allocation6 + $0x78] sm:$0xf]
    %v472 = vld [vmem:[#allocation6 + $0x7c] sm:$0xf]
    %v473 = vld [vmem:[#allocation6 + $0x80] sm:$0xf]
    %v474 = vld [vmem:[#allocation6 + $0x84] sm:$0xf]
    %v475 = vld [vmem:[#allocation6 + $0x88] sm:$0xf]
    %v476 = vld [vmem:[#allocation6 + $0x8c] sm:$0xf]
    %v477 = vld [vmem:[#allocation6 + $0x90] sm:$0xf]
    %v478 = vld [vmem:[#allocation6 + $0x94] sm:$0xf]
    %v479 = vld [vmem:[#allocation6 + $0x98] sm:$0xf]
    %v480 = vld [vmem:[#allocation6 + $0x9c] sm:$0xf]
    %v481 = vld [vmem:[#allocation6 + $0xa0] sm:$0xf]
    %v482 = vld [vmem:[#allocation6 + $0xa4] sm:$0xf]
    %v483 = vld [vmem:[#allocation6 + $0xa8] sm:$0xf]
    %v484 = vld [vmem:[#allocation6 + $0xac] sm:$0xf]
    %v485 = vld [vmem:[#allocation6 + $0xb0] sm:$0xf]
    %v486 = vld [vmem:[#allocation6 + $0xb4] sm:$0xf]
    %v487 = vld [vmem:[#allocation6 + $0xb8] sm:$0xf]
    %v488 = vld [vmem:[#allocation6 + $0xbc] sm:$0xf]
    %v489 = vld [vmem:[%s6 + $0x1] sm:$0x1]
    %v490 = vlaneseq
    %v491 = vshrl.u32 %v490, 7
    %v492 = vsub.s32 0, %v491
    %v493 = vrot.slane %v489, %v492
    %v542 = vunpack.c.l.b16 %v441
    %v543 = vunpack.c.l.b16 %v442
    %v544 = vunpack.c.l.b16 %v443
    %v545 = vunpack.c.l.b16 %v444
    %v546 = vunpack.c.l.b16 %v445
    %v547 = vunpack.c.l.b16 %v446
    %v548 = vunpack.c.l.b16 %v447
    %v549 = vunpack.c.l.b16 %v448
    %v550 = vunpack.c.l.b16 %v449
    %v551 = vunpack.c.l.b16 %v450
    %v552 = vunpack.c.l.b16 %v451
    %v553 = vunpack.c.l.b16 %v452
    %v554 = vunpack.c.l.b16 %v453
    %v555 = vunpack.c.l.b16 %v454
    %v556 = vunpack.c.l.b16 %v455
    %v557 = vunpack.c.l.b16 %v456
    %v558 = vunpack.c.l.b16 %v457
    %v559 = vunpack.c.l.b16 %v458
    %v560 = vunpack.c.l.b16 %v459
    %v561 = vunpack.c.l.b16 %v460
    %v562 = vunpack.c.l.b16 %v461
    %v563 = vunpack.c.l.b16 %v462
    %v564 = vunpack.c.l.b16 %v463
    %v565 = vunpack.c.l.b16 %v464
    %v566 = vunpack.c.l.b16 %v465
    %v567 = vunpack.c.l.b16 %v466
    %v568 = vunpack.c.l.b16 %v467
    %v569 = vunpack.c.l.b16 %v468
    %v570 = vunpack.c.l.b16 %v469
    %v571 = vunpack.c.l.b16 %v470
    %v572 = vunpack.c.l.b16 %v471
    %v573 = vunpack.c.l.b16 %v472
    %v574 = vunpack.c.l.b16 %v473
    %v575 = vunpack.c.l.b16 %v474
    %v576 = vunpack.c.l.b16 %v475
    %v577 = vunpack.c.l.b16 %v476
    %v578 = vunpack.c.l.b16 %v477
    %v579 = vunpack.c.l.b16 %v478
    %v580 = vunpack.c.l.b16 %v479
    %v581 = vunpack.c.l.b16 %v480
    %v582 = vunpack.c.l.b16 %v481
    %v583 = vunpack.c.l.b16 %v482
    %v584 = vunpack.c.l.b16 %v483
    %v585 = vunpack.c.l.b16 %v484
    %v586 = vunpack.c.l.b16 %v485
    %v587 = vunpack.c.l.b16 %v486
    %v588 = vunpack.c.l.b16 %v487
    %v589 = vunpack.c.l.b16 %v488
    %v590 = vpack.c.b16 %v543, %v542
    %v591 = vpack.c.b16 %v545, %v544
    %v592 = vpack.c.b16 %v547, %v546
    %v593 = vpack.c.b16 %v549, %v548
    %v594 = vpack.c.b16 %v551, %v550
    %v595 = vpack.c.b16 %v553, %v552
    %v596 = vpack.c.b16 %v555, %v554
    %v597 = vpack.c.b16 %v557, %v556
    %v598 = vpack.c.b16 %v559, %v558
    %v599 = vpack.c.b16 %v561, %v560
    %v600 = vpack.c.b16 %v563, %v562
    %v601 = vpack.c.b16 %v565, %v564
    %v602 = vpack.c.b16 %v567, %v566
    %v603 = vpack.c.b16 %v569, %v568
    %v604 = vpack.c.b16 %v571, %v570
    %v605 = vpack.c.b16 %v573, %v572
    %v606 = vpack.c.b16 %v575, %v574
    %v607 = vpack.c.b16 %v577, %v576
    %v608 = vpack.c.b16 %v579, %v578
    %v609 = vpack.c.b16 %v581, %v580
    %v610 = vpack.c.b16 %v583, %v582
    %v611 = vpack.c.b16 %v585, %v584
    %v612 = vpack.c.b16 %v587, %v586
    %v613 = vpack.c.b16 %v589, %v588
    %638 = vmatprep.subr.bf16.mxu0 0
    %639 = vmatpush1.bf16.msra.mxu0 %v597
    %640 = vmatprep.subr.bf16.mxu0 0
    %641 = vmatpush1.bf16.msra.mxu0 %v596
    %642 = vmatprep.subr.bf16.mxu0 0
    %643 = vmatpush1.bf16.msra.mxu0 %v595
    %644 = vmatprep.subr.bf16.mxu0 0
    %645 = vmatpush1.bf16.msra.mxu0 %v594
    %646 = vmatprep.subr.bf16.mxu0 0
    %647 = vmatpush1.bf16.msra.mxu0 %v593
    %648 = vmatprep.subr.bf16.mxu0 0
    %649 = vmatpush1.bf16.msra.mxu0 %v592
    %650 = vmatprep.subr.bf16.mxu0 0
    %651 = vmatpush1.bf16.msra.mxu0 %v591
    %652 = vmatprep.subr.bf16.mxu0 0
    %653 = vmatpush1.bf16.msra.mxu0 %v590
    %654 = vmatprep.subr.bf16.mxu0 0
    %655 = vmatpush2.bf16.msra.mxu0 %v605
    %656 = vmatprep.subr.bf16.mxu0 0
    %657 = vmatpush2.bf16.msra.mxu0 %v604
    %658 = vmatprep.subr.bf16.mxu0 0
    %659 = vmatpush2.bf16.msra.mxu0 %v603
    %660 = vmatprep.subr.bf16.mxu0 0
    %661 = vmatpush2.bf16.msra.mxu0 %v602
    %662 = vmatprep.subr.bf16.mxu0 0
    %663 = vmatpush2.bf16.msra.mxu0 %v601
    %664 = vmatprep.subr.bf16.mxu0 0
    %665 = vmatpush2.bf16.msra.mxu0 %v600
    %666 = vmatprep.subr.bf16.mxu0 0
    %667 = vmatpush2.bf16.msra.mxu0 %v599
    %668 = vmatprep.subr.bf16.mxu0 0
    %669 = vmatpush2.bf16.msra.mxu0 %v598
    %670 = vmatprep.mubr.bf16.mxu0 %v428
    %671 = vmatmul.mubr.bf16.gmra.mxu0 %v415
    %v672 = vpop.f32.mrf.mxu0
    %v673 = vadd.f32 %v493, %v672
    %v674 = vpop.f32.mrf.mxu0
    %v675 = vpop.f32.mrf.mxu0
    %v676 = vadd.f32 %v493, %v675
    %v677 = vpop.f32.mrf.mxu0
    %678 = vmatprep.mubr.bf16.mxu0 %v431
    %679 = vmatmul.mubr.bf16.gmra.mxu0 %v416
    %v680 = vpop.f32.mrf.mxu0
    %v681 = vadd.f32 %v493, %v680
    %v682 = vpop.f32.mrf.mxu0
    %v683 = vpop.f32.mrf.mxu0
    %v684 = vpop.f32.mrf.mxu0
    %685 = vdwg.mxu0
    %686 = vmatprep.subr.bf16.mxu0 0
    %687 = vmatpush1.bf16.msra.mxu0 %v613
    %688 = vmatprep.subr.bf16.mxu0 0
    %689 = vmatpush1.bf16.msra.mxu0 %v612
    %690 = vmatprep.subr.bf16.mxu0 0
    %691 = vmatpush1.bf16.msra.mxu0 %v611
    %692 = vmatprep.subr.bf16.mxu0 0
    %693 = vmatpush1.bf16.msra.mxu0 %v610
    %694 = vmatprep.subr.bf16.mxu0 0
    %695 = vmatpush1.bf16.msra.mxu0 %v609
    %696 = vmatprep.subr.bf16.mxu0 0
    %697 = vmatpush1.bf16.msra.mxu0 %v608
    %698 = vmatprep.subr.bf16.mxu0 0
    %699 = vmatpush1.bf16.msra.mxu0 %v607
    %700 = vmatprep.subr.bf16.mxu0 0
    %701 = vmatpush1.bf16.msra.mxu0 %v606
    %702 = vmatprep.subr.bf16.mxu0 0
    %703 = vmatpush2.bf16.msra.mxu0 0
    %704 = vmatprep.subr.bf16.mxu0 0
    %705 = vmatpush2.bf16.msra.mxu0 0
    %706 = vmatprep.subr.bf16.mxu0 0
    %707 = vmatpush2.bf16.msra.mxu0 0
    %708 = vmatprep.subr.bf16.mxu0 0
    %709 = vmatpush2.bf16.msra.mxu0 0
    %710 = vmatprep.subr.bf16.mxu0 0
    %711 = vmatpush2.bf16.msra.mxu0 0
    %712 = vmatprep.subr.bf16.mxu0 0
    %713 = vmatpush2.bf16.msra.mxu0 0
    %714 = vmatprep.subr.bf16.mxu0 0
    %715 = vmatpush2.bf16.msra.mxu0 0
    %716 = vmatprep.subr.bf16.mxu0 0
    %717 = vmatpush2.bf16.msra.mxu0 0
    %718 = vmatprep.mubr.bf16.mxu0 0
    %719 = vmatmul.mubr.bf16.gmra.mxu0 %v438
    %v720 = vpop.f32.mrf.mxu0
    %v721 = vadd.f32 %v673, %v720
    %v722 = vpop.f32.mrf.mxu0
    %v723 = vpop.f32.mrf.mxu0
    %v724 = vadd.f32 %v676, %v723
    %v725 = vpop.f32.mrf.mxu0
    %726 = vmatprep.mubr.bf16.mxu0 0
    %727 = vmatmul.mubr.bf16.gmra.mxu0 %v437
    %v728 = vpop.f32.mrf.mxu0
    %v729 = vadd.f32 %v681, %v728
    %v730 = vpop.f32.mrf.mxu0
    %v731 = vpop.f32.mrf.mxu0
    %v732 = vpop.f32.mrf.mxu0
    %733 = vdwg.mxu0
    %v734 = vmax.f32 %v721, 0.0
    %v735 = vmax.f32 %v724, 0.0
    %v736 = vmax.f32 %v729, 0.0
    %v737 = vpack.c.bf16 %v735, %v734
    %v738 = vpack.c.bf16 %v736, %v736
    %v739 = vld [vmem:[#allocation7] sm:$0xf]
    %v740 = vld [vmem:[#allocation7 + $0x4] sm:$0xf]
    %v741 = vld [vmem:[#allocation7 + $0x8] sm:$0xf]
    %v742 = vld [vmem:[#allocation7 + $0xc] sm:$0xf]
    %v743 = vld [vmem:[#allocation7 + $0x10] sm:$0xf]
    %v744 = vld [vmem:[#allocation7 + $0x14] sm:$0xf]
    %v745 = vld [vmem:[#allocation7 + $0x18] sm:$0xf]
    %v746 = vld [vmem:[#allocation7 + $0x1c] sm:$0xf]
    %v747 = vld [vmem:[#allocation7 + $0x20] sm:$0xf]
    %v748 = vld [vmem:[#allocation7 + $0x24] sm:$0xf]
    %v749 = vld [vmem:[#allocation7 + $0x28] sm:$0xf]
    %v750 = vld [vmem:[#allocation7 + $0x2c] sm:$0xf]
    %v751 = vld [vmem:[#allocation7 + $0x30] sm:$0xf]
    %v752 = vld [vmem:[#allocation7 + $0x34] sm:$0xf]
    %v753 = vld [vmem:[#allocation7 + $0x38] sm:$0xf]
    %v754 = vld [vmem:[#allocation7 + $0x3c] sm:$0xf]
    %v755 = vld [vmem:[%s6 + $0x2] sm:$0x1]
    %v756 = vlaneseq
    %v757 = vshrl.u32 %v756, 7
    %v758 = vsub.s32 0, %v757
    %v759 = vrot.slane %v755, %v758
    %v776 = vunpack.c.l.b16 %v739
    %v777 = vunpack.c.l.b16 %v740
    %v778 = vunpack.c.l.b16 %v741
    %v779 = vunpack.c.l.b16 %v742
    %v780 = vunpack.c.l.b16 %v743
    %v781 = vunpack.c.l.b16 %v744
    %v782 = vunpack.c.l.b16 %v745
    %v783 = vunpack.c.l.b16 %v746
    %v784 = vunpack.c.l.b16 %v747
    %v785 = vunpack.c.l.b16 %v748
    %v786 = vunpack.c.l.b16 %v749
    %v787 = vunpack.c.l.b16 %v750
    %v788 = vunpack.c.l.b16 %v751
    %v789 = vunpack.c.l.b16 %v752
    %v790 = vunpack.c.l.b16 %v753
    %v791 = vunpack.c.l.b16 %v754
    %v792 = vpack.c.b16 %v777, %v776
    %v793 = vpack.c.b16 %v779, %v778
    %v794 = vpack.c.b16 %v781, %v780
    %v795 = vpack.c.b16 %v783, %v782
    %v796 = vpack.c.b16 %v785, %v784
    %v797 = vpack.c.b16 %v787, %v786
    %v798 = vpack.c.b16 %v789, %v788
    %v799 = vpack.c.b16 %v791, %v790
    %808 = vmatprep.subr.bf16.mxu0 0
    %809 = vmatpush1.bf16.msra.mxu0 %v799
    %810 = vmatprep.subr.bf16.mxu0 0
    %811 = vmatpush1.bf16.msra.mxu0 %v798
    %812 = vmatprep.subr.bf16.mxu0 0
    %813 = vmatpush1.bf16.msra.mxu0 %v797
    %814 = vmatprep.subr.bf16.mxu0 0
    %815 = vmatpush1.bf16.msra.mxu0 %v796
    %816 = vmatprep.subr.bf16.mxu0 0
    %817 = vmatpush1.bf16.msra.mxu0 %v795
    %818 = vmatprep.subr.bf16.mxu0 0
    %819 = vmatpush1.bf16.msra.mxu0 %v794
    %820 = vmatprep.subr.bf16.mxu0 0
    %821 = vmatpush1.bf16.msra.mxu0 %v793
    %822 = vmatprep.subr.bf16.mxu0 0
    %823 = vmatpush1.bf16.msra.mxu0 %v792
    %824 = vmatprep.subr.bf16.mxu0 0
    %825 = vmatpush2.bf16.msra.mxu0 0
    %826 = vmatprep.subr.bf16.mxu0 0
    %827 = vmatpush2.bf16.msra.mxu0 0
    %828 = vmatprep.subr.bf16.mxu0 0
    %829 = vmatpush2.bf16.msra.mxu0 0
    %830 = vmatprep.subr.bf16.mxu0 0
    %831 = vmatpush2.bf16.msra.mxu0 0
    %832 = vmatprep.subr.bf16.mxu0 0
    %833 = vmatpush2.bf16.msra.mxu0 0
    %834 = vmatprep.subr.bf16.mxu0 0
    %835 = vmatpush2.bf16.msra.mxu0 0
    %836 = vmatprep.subr.bf16.mxu0 0
    %837 = vmatpush2.bf16.msra.mxu0 0
    %838 = vmatprep.subr.bf16.mxu0 0
    %839 = vmatpush2.bf16.msra.mxu0 0
    %840 = vmatprep.mubr.bf16.mxu0 0
    %841 = vmatmul.mubr.bf16.gmra.mxu0 %v737
    %v842 = vpop.f32.mrf.mxu0
    %v843 = vadd.f32 %v759, %v842
    %v844 = vpop.f32.mrf.mxu0
    %v845 = vpop.f32.mrf.mxu0
    %v846 = vadd.f32 %v759, %v845
    %v847 = vpop.f32.mrf.mxu0
    %848 = vmatprep.mubr.bf16.mxu0 0
    %849 = vmatmul.mubr.bf16.gmra.mxu0 %v738
    %v850 = vpop.f32.mrf.mxu0
    %v851 = vadd.f32 %v759, %v850
    %v852 = vpop.f32.mrf.mxu0
    %v853 = vpop.f32.mrf.mxu0
    %v854 = vpop.f32.mrf.mxu0
    %855 = vdwg.mxu0
    %v856 = vmax.f32 %v843, 0.0
    %v857 = vmax.f32 %v846, 0.0
    %v858 = vmax.f32 %v851, 0.0
    %v859 = vld [vmem:[%s1] sm:$0xff]
    %v860 = vld [vmem:[%s1 + $0x8] sm:$0xff]
    %v861 = vld [vmem:[%s1 + $0x10] sm:$0xf]
    %v862 = vadd.f32 %v859, %v856
    %v863 = vadd.f32 %v860, %v857
    %v864 = vadd.f32 %v861, %v858
    %865 = vst [vmem:[%s7] sm:$0xff] %v862
    %866 = vst [vmem:[%s7 + $0x8] sm:$0xff] %v863
    %867 = vst [vmem:[%s7 + $0x10] sm:$0xf] %v864
    // Predicated region
    $region46: #{tpu_custom_call.1} parent=1 // pred_check
      _
    $region47: #{tpu_custom_call.1} parent=1 // pred_check_branch
      %869 = sbr.rel (0) target = $region49
    $region48: #{tpu_custom_call.1} parent=1 // pred_region
      _
    $region49: #{tpu_custom_call.1} parent=1 // pred_fallthru
      _
    // Predicated region
    $region50: #{tpu_custom_call.1} parent=1 // pred_check
      _
    $region51: #{tpu_custom_call.1} parent=1 // pred_check_branch
      %871 = sbr.rel (0) target = $region53
    $region52: #{tpu_custom_call.1} parent=1 // pred_region
      _
    $region53: #{tpu_custom_call.1} parent=1 // pred_fallthru
      _
    %872 = vsyncpa [#allocation3], 1
    %873 = vsyncpa [#allocation5], 1
    %874 = vsyncpa [#allocation8], 1

</llo_original>
